<compile_context>
chip_gen: v6e
topology: v6e:2x2x1
jax: 0.10.0
libtpu: 0.0.40
codegen_flags: <defaults>
</compile_context>

<pallas_src>
import functools

import jax
import jax.numpy as jnp
from jax.experimental import pallas as pl
from jax.experimental.pallas import tpu as pltpu


# --------------------------------------------------------------------------
# Pallas kernel
# --------------------------------------------------------------------------
def qmix_kernel(scalars_ref,            # SMEM (2,): [gate, V final bias]
                st_ref, qs_ref,         # (blk, S), (blk, NAQ) -- native dtype (bf16 ok)
                wcat_ref, bcat_ref,     # fused hypernets: (S, NAQ*E+3E) [param dtype], (1, NAQ*E+3E) f32
                expand_ref,             # (NAQ, NAQ*E) [param dtype] block one-hot (repeat across E lanes)
                gather_ref,             # (NAQ*E, E)   f32 stacked identities (sum over agents)
                wv2_ref,                # (1, E)       f32 V second-layer weight as a row
                out_ref,                # (blk, 1)
                *, n_aq, embed_dim, gated, skip_connections):
    E = embed_dim
    naq_e = n_aq * E

    st = st_ref[...]      # keep native dtype: bf16 x bf16 -> f32 is single-pass MXU
    qs = qs_ref[...]

    # One fused MXU matmul for all four state-side hypernet layers (f32 accumulate).
    h_all = (jnp.dot(st, wcat_ref[...], preferred_element_type=jnp.float32)
             + bcat_ref[...])                     # (blk, NAQ*E + 3E) f32
    w1 = jnp.abs(h_all[:, :naq_e])                        # |hyper_w_1(s)|   (blk, NAQ*E)
    b1 = h_all[:, naq_e:naq_e + E]                        # hyper_b_1(s)     (blk, E)
    wf = jnp.abs(h_all[:, naq_e + E:naq_e + 2 * E])       # |hyper_w_fin(s)| (blk, E)
    vh = jnp.maximum(h_all[:, naq_e + 2 * E:naq_e + 3 * E], 0.0)   # relu(V[0](s))

    # Batched mixing "bmm" on the MXU:
    #   qs_rep[b, a*E+e] = qs[b, a] ;  hidden_raw[b, e] = sum_a qs[b,a]*w1[b,a*E+e]
    qs_rep = jnp.dot(qs, expand_ref[...], preferred_element_type=jnp.float32)
    hidden_raw = jnp.dot(qs_rep * w1, gather_ref[...],
                         preferred_element_type=jnp.float32)        # (blk, E) f32

    pre = hidden_raw + b1
    # ELU(alpha=1); clamp the exp argument so the discarded branch stays finite.
    # TODO(synk): jnp.expm1 would match jax.nn.elu numerics exactly, but its
    # Mosaic lowering is not guaranteed, so keep exp(x)-1 (diff ~1e-7).
    hidden = jnp.where(pre > 0.0, pre, jnp.exp(jnp.minimum(pre, 0.0)) - 1.0)

    # Fused scalar tail: fold the gate into the E-wide domain and do a single
    # lane reduce (no separate v-reduce, no post-reduce gate multiply).
    wf_eff = wf * scalars_ref[0] if gated else wf
    contrib = hidden * wf_eff + vh * wv2_ref[...]          # (blk, E)
    y = jnp.sum(contrib, axis=-1, keepdims=True) + scalars_ref[1]
    if skip_connections:
        y = y + jnp.sum(qs.astype(jnp.float32), axis=-1, keepdims=True)

    # TODO(synk): a lane-dense (blk//128, 128) output store would cut masked
    # per-vreg stores ~128x, but the required (blk,1)->(blk//128,128) relayout
    # is not guaranteed to lower in Mosaic, so keep the known-good column store.
    out_ref[...] = y.astype(out_ref.dtype)


# --------------------------------------------------------------------------
# Parameter packing (hoisted out of the per-call wrapper; call once per update)
# --------------------------------------------------------------------------
def prepare_qmix_params(params, *, n_agents, q_embed_dim, embed_dim, gated,
                        dtype=jnp.float32):
    f32 = jnp.float32
    n_aq = n_agents * q_embed_dim
    E = embed_dim
    # Fused state-side hypernet weights (hyper_w_1 first -> 128-lane aligned).
    w_cat = jnp.concatenate([params["w_h1"], params["w_b1"],
                             params["w_wf"], params["w_v1"]],
                            axis=1).astype(dtype)           # (S, NAQ*E + 3E)
    b_cat = jnp.concatenate([params["b_h1"], params["b_b1"],
                             params["b_wf"], params["b_v1"]],
                            axis=1).astype(f32)             # (1, NAQ*E + 3E)
    # MXU helper matrices for the per-agent contraction (0/1 -> exact in bf16).
    expand = jnp.kron(jnp.eye(n_aq, dtype=f32),
                      jnp.ones((1, E), f32)).astype(dtype)  # (NAQ, NAQ*E)
    gather = jnp.kron(jnp.ones((n_aq, 1), f32),
                      jnp.eye(E, dtype=f32))                # (NAQ*E, E), f32
    w_v2_row = params["w_v2"].reshape(1, E).astype(f32)
    gate_val = params["gate"].reshape(-1)[0] if gated else jnp.float32(1.0)
    scalars = jnp.stack([jnp.asarray(gate_val, f32),
                         jnp.asarray(params["b_v2"].reshape(-1)[0], f32)]
                        ).astype(f32)                       # SMEM scalars
    return dict(w_cat=w_cat, b_cat=b_cat, expand=expand, gather=gather,
                w_v2_row=w_v2_row, scalars=scalars,
                state_dim=int(params["w_h1"].shape[0]))


# --------------------------------------------------------------------------
# Wrapper
# --------------------------------------------------------------------------
def qmixer_forward(agent_qs, states, packed, *, n_agents, q_embed_dim,
                   embed_dim, gated, skip_connections, block_b=2048):
    # TODO(synk): only the hypernet_layers == 1 configuration is implemented;
    # the 2-layer hypernetwork variant would need an extra fused matmul+ReLU.
    bs = agent_qs.shape[0]
    n_aq = n_agents * q_embed_dim
    state_dim = packed["state_dim"]

    states2 = states.reshape(-1, state_dim)       # (B, S)   dtype preserved (bf16 ok)
    qs2 = agent_qs.reshape(-1, n_aq)              # (B, NAQ)
    B = qs2.shape[0]

    # Large row tiles amortise per-step pipeline overhead; keep the grid-step
    # count even whenever >1 tile so v7x's two TensorCores get equal work.
    blk = max(8, min((int(block_b) // 8) * 8, ((B + 7) // 8) * 8))
    n_steps = -(-B // blk)
    if n_steps > 1 and n_steps % 2 == 1:
        n_steps += 1
        blk = max(8, ((-(-B // n_steps) + 7) // 8) * 8)
    b_pad = n_steps * blk
    if b_pad != B:
        states2 = jnp.pad(states2, ((0, b_pad - B), (0, 0)))
        qs2 = jnp.pad(qs2, ((0, b_pad - B), (0, 0)))

    kern = functools.partial(qmix_kernel, n_aq=n_aq, embed_dim=embed_dim,
                             gated=gated, skip_connections=skip_connections)

    def row_spec(cols):
        return pl.BlockSpec((blk, cols), lambda i, s: (i, 0))

    def full_spec(arr):
        nd = arr.ndim
        return pl.BlockSpec(arr.shape, lambda i, s, _nd=nd: (0,) * _nd)

    w_cat, b_cat = packed["w_cat"], packed["b_cat"]
    expand, gather = packed["expand"], packed["gather"]
    w_v2_row, scalars = packed["w_v2_row"], packed["scalars"]

    out = pl.pallas_call(
        kern,
        out_shape=jax.ShapeDtypeStruct((b_pad, 1), jnp.float32),
        grid_spec=pltpu.PrefetchScalarGridSpec(
            num_scalar_prefetch=1,                 # gate + V final bias -> SMEM
            grid=(n_steps,),
            in_specs=[
                row_spec(state_dim),               # states, tiled over rows
                row_spec(n_aq),                    # agent_qs, tiled over rows
                full_spec(w_cat), full_spec(b_cat),    # resident packed params
                full_spec(expand), full_spec(gather),
                full_spec(w_v2_row),
            ],
            out_specs=pl.BlockSpec((blk, 1), lambda i, s: (i, 0)),
        ),
        compiler_params=pltpu.CompilerParams(
            dimension_semantics=("parallel",),
            vmem_limit_bytes=48 * 1024 * 1024),
    )(scalars, states2, qs2, w_cat, b_cat, expand, gather, w_v2_row)

    return out[:B].reshape(bs, -1, 1)              # q_tot : (bs, T, 1)


# --------------------------------------------------------------------------
# Pure-JAX reference (mirrors the PyTorch forward exactly)
# --------------------------------------------------------------------------
def qmixer_ref(agent_qs, states, params, *, n_agents, q_embed_dim,
               embed_dim, gated, skip_connections):
    bs = agent_qs.shape[0]
    n_aq = n_agents * q_embed_dim
    state_dim = params["w_h1"].shape[0]
    st = states.reshape(-1, state_dim)
    qs = agent_qs.reshape(-1, 1, n_aq)

    w1 = jnp.abs(st @ params["w_h1"] + params["b_h1"]).reshape(-1, n_aq, embed_dim)
    b1 = (st @ params["w_b1"] + params["b_b1"]).reshape(-1, 1, embed_dim)
    hidden = jax.nn.elu(jnp.einsum("bik,bkj->bij", qs, w1) + b1)
    wf = jnp.abs(st @ params["w_wf"] + params["b_wf"]).reshape(-1, embed_dim, 1)
    v = (jnp.maximum(st @ params["w_v1"] + params["b_v1"], 0.0) @ params["w_v2"]
         + params["b_v2"]).reshape(-1, 1, 1)
    y = jnp.einsum("bik,bkj->bij", hidden, wf)
    if gated:
        y = y * params["gate"][0]
    y = y + v
    if skip_connections:
        y = y + jnp.sum(qs, axis=2, keepdims=True)
    return y.reshape(bs, -1, 1)


# --------------------------------------------------------------------------
# Main
# --------------------------------------------------------------------------
if __name__ == "__main__":
    # args: hypernet_layers=1, hyper_initialization_nonzeros=0
    n_agents = 4
    q_embed_dim = 1
    state_dim = 32
    embed_dim = 32
    gated = True
    skip_connections = True
    n_aq = n_agents * q_embed_dim

    key = jax.random.PRNGKey(0)
    ks = jax.random.split(key, 16)

    def lin(kw, kb, fan_in, fan_out):
        lim = 1.0 / jnp.sqrt(fan_in)
        w = jax.random.uniform(kw, (fan_in, fan_out), jnp.float32, -lim, lim)
        b = jax.random.uniform(kb, (1, fan_out), jnp.float32, -lim, lim)
        return w, b

    w_h1, b_h1 = lin(ks[0], ks[1], state_dim, embed_dim * n_aq)   # hyper_w_1
    w_b1, b_b1 = lin(ks[2], ks[3], state_dim, embed_dim)          # hyper_b_1
    w_wf, b_wf = lin(ks[4], ks[5], state_dim, embed_dim)          # hyper_w_final
    w_v1, b_v1 = lin(ks[6], ks[7], state_dim, embed_dim)          # V[0]
    w_v2, b_v2 = lin(ks[8], ks[9], embed_dim, 1)                  # V[2]
    gate = jnp.full((1,), 0.5, jnp.float32)                       # nn.Parameter(0.5)

    params = dict(w_h1=w_h1, b_h1=b_h1, w_b1=w_b1, b_b1=b_b1,
                  w_wf=w_wf, b_wf=b_wf, w_v1=w_v1, b_v1=b_v1,
                  w_v2=w_v2, b_v2=b_v2, gate=gate)

    cfg = dict(n_agents=n_agents, q_embed_dim=q_embed_dim, embed_dim=embed_dim,
               gated=gated, skip_connections=skip_connections)
    pack_cfg = dict(n_agents=n_agents, q_embed_dim=q_embed_dim,
                    embed_dim=embed_dim, gated=gated)

    # Pack once (f32 exact path and bf16 fast path), reuse across forward calls.
    packed_f32 = prepare_qmix_params(params, dtype=jnp.float32, **pack_cfg)
    packed_bf16 = prepare_qmix_params(params, dtype=jnp.bfloat16, **pack_cfg)

    # --- small case: B = 8 rows, single tiny tile (f32 exact path) ---------
    bs, T = 2, 4
    agent_qs = jax.random.normal(ks[10], (bs, T, n_aq), jnp.float32)
    states = jax.random.normal(ks[11], (bs, T, state_dim), jnp.float32)
    q_tot = jax.block_until_ready(
        qmixer_forward(agent_qs, states, packed_f32, **cfg))
    q_ref = qmixer_ref(agent_qs, states, params, **cfg)
    assert q_tot.shape == (bs, T, 1), q_tot.shape
    assert jnp.allclose(q_tot, q_ref, atol=1e-3, rtol=1e-3), (
        float(jnp.max(jnp.abs(q_tot - q_ref))))

    # --- larger case: multi-step grid, odd->even step adjust, padding ------
    bs2, T2 = 40, 52          # B = 2080; block_b=512 -> 5 steps -> evened to 6
    agent_qs2 = jax.random.normal(ks[12], (bs2, T2, n_aq), jnp.float32)
    states_l = jax.random.normal(ks[13], (bs2, T2, state_dim), jnp.float32)
    q_tot2 = jax.block_until_ready(
        qmixer_forward(agent_qs2, states_l, packed_f32, block_b=512, **cfg))
    q_ref2 = qmixer_ref(agent_qs2, states_l, params, **cfg)
    assert q_tot2.shape == (bs2, T2, 1), q_tot2.shape
    assert jnp.allclose(q_tot2, q_ref2, atol=1e-3, rtol=1e-3), (
        float(jnp.max(jnp.abs(q_tot2 - q_ref2))))

    # --- bf16 fast path: bf16 states/qs + bf16 packed hypernet weights -----
    bf16 = jnp.bfloat16
    aq_bf = agent_qs2.astype(bf16)
    st_bf = states_l.astype(bf16)
    q_bf = jax.block_until_ready(
        qmixer_forward(aq_bf, st_bf, packed_bf16, **cfg))   # blk=2048, 2 steps
    # Reference with the same bf16-rounded inputs/weights, computed in f32.
    params_q = dict(params)
    for k in ("w_h1", "w_b1", "w_wf", "w_v1"):
        params_q[k] = params[k].astype(bf16).astype(jnp.float32)
    q_ref_bf = qmixer_ref(aq_bf.astype(jnp.float32), st_bf.astype(jnp.float32),
                          params_q, **cfg)
    assert q_bf.shape == (bs2, T2, 1), q_bf.shape
    assert jnp.allclose(q_bf, q_ref_bf, atol=2e-2, rtol=2e-2), (
        float(jnp.max(jnp.abs(q_bf - q_ref_bf))))

    print("KERNEL_OK")
</pallas_src>

<mosaic_0001>
module attributes {stable_mosaic.version = 11 : i64} {
  func.func @qmix_kernel(%arg0: i32, %arg1: memref<2xf32, #tpu.memory_space<smem>>, %arg2: memref<8x32xf32, #tpu.memory_space<vmem>>, %arg3: memref<8x4xf32, #tpu.memory_space<vmem>>, %arg4: memref<32x224xf32, #tpu.memory_space<vmem>>, %arg5: memref<1x224xf32, #tpu.memory_space<vmem>>, %arg6: memref<4x128xf32, #tpu.memory_space<vmem>>, %arg7: memref<128x32xf32, #tpu.memory_space<vmem>>, %arg8: memref<1x32xf32, #tpu.memory_space<vmem>>, %arg9: memref<8x1xf32, #tpu.memory_space<vmem>>) attributes {dimension_semantics = [#tpu.dimension_semantics<parallel>], iteration_bounds = array<i64: 1>, scalar_prefetch = 1 : i64, scratch_operands = 0 : i64, tpu.core_type = #tpu.core_type<tc>, window_params = [{transform_indices = @transform_0, window_bounds = array<i64: 8, 32>}, {transform_indices = @transform_1, window_bounds = array<i64: 8, 4>}, {pipeline_mode = #tpu.pipeline_mode<synchronous>, transform_indices = @transform_2, window_bounds = array<i64: 32, 224>}, {pipeline_mode = #tpu.pipeline_mode<synchronous>, transform_indices = @transform_3, window_bounds = array<i64: 1, 224>}, {pipeline_mode = #tpu.pipeline_mode<synchronous>, transform_indices = @transform_4, window_bounds = array<i64: 4, 128>}, {pipeline_mode = #tpu.pipeline_mode<synchronous>, transform_indices = @transform_5, window_bounds = array<i64: 128, 32>}, {pipeline_mode = #tpu.pipeline_mode<synchronous>, transform_indices = @transform_6, window_bounds = array<i64: 1, 32>}, {transform_indices = @transform_7, window_bounds = array<i64: 8, 1>}]} {
    %c0 = arith.constant 0 : index
    %c0_0 = arith.constant 0 : index
    %0 = vector.load %arg2[%c0, %c0_0] : memref<8x32xf32, #tpu.memory_space<vmem>>, vector<8x32xf32>
    %c0_1 = arith.constant 0 : index
    %c0_2 = arith.constant 0 : index
    %1 = vector.load %arg3[%c0_1, %c0_2] : memref<8x4xf32, #tpu.memory_space<vmem>>, vector<8x4xf32>
    %c0_3 = arith.constant 0 : index
    %c0_4 = arith.constant 0 : index
    %2 = vector.load %arg4[%c0_3, %c0_4] : memref<32x224xf32, #tpu.memory_space<vmem>>, vector<32x224xf32>
    %cst = arith.constant dense<0.000000e+00> : vector<8x224xf32>
    %3 = tpu.matmul %0, %2, %cst {dimension_numbers = #tpu.dot_dimension_numbers<[1], [0], [0], [1], [0, 0, 1, 1], [], []>} : vector<8x32xf32>, vector<32x224xf32>, vector<8x224xf32> -> vector<8x224xf32>
    %c0_5 = arith.constant 0 : index
    %c0_6 = arith.constant 0 : index
    %4 = vector.load %arg5[%c0_5, %c0_6] : memref<1x224xf32, #tpu.memory_space<vmem>>, vector<1x224xf32>
    %5 = vector.broadcast %4 : vector<1x224xf32> to vector<8x224xf32>
    %6 = arith.addf %3, %5 : vector<8x224xf32>
    %7 = vector.extract_strided_slice %6 {offsets = [0, 0], sizes = [8, 128], strides = [1, 1]} : vector<8x224xf32> to vector<8x128xf32>
    %8 = math.absf %7 : vector<8x128xf32>
    %9 = vector.extract_strided_slice %6 {offsets = [0, 128], sizes = [8, 32], strides = [1, 1]} : vector<8x224xf32> to vector<8x32xf32>
    %10 = vector.extract_strided_slice %6 {offsets = [0, 160], sizes = [8, 32], strides = [1, 1]} : vector<8x224xf32> to vector<8x32xf32>
    %11 = math.absf %10 : vector<8x32xf32>
    %12 = vector.extract_strided_slice %6 {offsets = [0, 192], sizes = [8, 32], strides = [1, 1]} : vector<8x224xf32> to vector<8x32xf32>
    %cst_7 = arith.constant 0.000000e+00 : f32
    %13 = vector.broadcast %cst_7 : f32 to vector<8x32xf32>
    %14 = arith.maximumf %12, %13 : vector<8x32xf32>
    %c0_8 = arith.constant 0 : index
    %c0_9 = arith.constant 0 : index
    %15 = vector.load %arg6[%c0_8, %c0_9] : memref<4x128xf32, #tpu.memory_space<vmem>>, vector<4x128xf32>
    %cst_10 = arith.constant dense<0.000000e+00> : vector<8x128xf32>
    %16 = tpu.matmul %1, %15, %cst_10 {dimension_numbers = #tpu.dot_dimension_numbers<[1], [0], [0], [1], [0, 0, 1, 1], [], []>} : vector<8x4xf32>, vector<4x128xf32>, vector<8x128xf32> -> vector<8x128xf32>
    %17 = arith.mulf %16, %8 : vector<8x128xf32>
    %c0_11 = arith.constant 0 : index
    %c0_12 = arith.constant 0 : index
    %18 = vector.load %arg7[%c0_11, %c0_12] : memref<128x32xf32, #tpu.memory_space<vmem>>, vector<128x32xf32>
    %cst_13 = arith.constant dense<0.000000e+00> : vector<8x32xf32>
    %19 = tpu.matmul %17, %18, %cst_13 {dimension_numbers = #tpu.dot_dimension_numbers<[1], [0], [0], [1], [0, 0, 1, 1], [], []>} : vector<8x128xf32>, vector<128x32xf32>, vector<8x32xf32> -> vector<8x32xf32>
    %20 = arith.addf %19, %9 : vector<8x32xf32>
    %cst_14 = arith.constant 0.000000e+00 : f32
    %21 = vector.broadcast %cst_14 : f32 to vector<8x32xf32>
    %22 = arith.cmpf ogt, %20, %21 : vector<8x32xf32>
    %cst_15 = arith.constant 0.000000e+00 : f32
    %23 = vector.broadcast %cst_15 : f32 to vector<8x32xf32>
    %24 = arith.minimumf %20, %23 : vector<8x32xf32>
    %25 = math.exp %24 : vector<8x32xf32>
    %cst_16 = arith.constant 1.000000e+00 : f32
    %26 = vector.broadcast %cst_16 : f32 to vector<8x32xf32>
    %27 = arith.subf %25, %26 : vector<8x32xf32>
    %28 = arith.select %22, %20, %27 : vector<8x32xi1>, vector<8x32xf32>
    %c0_17 = arith.constant 0 : index
    %29 = memref.load %arg1[%c0_17] : memref<2xf32, #tpu.memory_space<smem>>
    %30 = vector.broadcast %29 : f32 to vector<8x32xf32>
    %31 = arith.mulf %11, %30 : vector<8x32xf32>
    %32 = arith.mulf %28, %31 : vector<8x32xf32>
    %c0_18 = arith.constant 0 : index
    %c0_19 = arith.constant 0 : index
    %33 = vector.load %arg8[%c0_18, %c0_19] : memref<1x32xf32, #tpu.memory_space<vmem>>, vector<1x32xf32>
    %34 = vector.broadcast %33 : vector<1x32xf32> to vector<8x32xf32>
    %35 = arith.mulf %14, %34 : vector<8x32xf32>
    %36 = arith.addf %32, %35 : vector<8x32xf32>
    %cst_20 = arith.constant dense<0.000000e+00> : vector<8xf32>
    %37 = vector.multi_reduction <add>, %36, %cst_20 [1] : vector<8x32xf32> to vector<8xf32>
    %38 = vector.shape_cast %37 : vector<8xf32> to vector<8x1xf32>
    %c1 = arith.constant 1 : index
    %39 = memref.load %arg1[%c1] : memref<2xf32, #tpu.memory_space<smem>>
    %40 = vector.broadcast %39 : f32 to vector<8x1xf32>
    %41 = arith.addf %38, %40 : vector<8x1xf32>
    %cst_21 = arith.constant dense<0.000000e+00> : vector<8xf32>
    %42 = vector.multi_reduction <add>, %1, %cst_21 [1] : vector<8x4xf32> to vector<8xf32>
    %43 = vector.shape_cast %42 : vector<8xf32> to vector<8x1xf32>
    %44 = arith.addf %41, %43 : vector<8x1xf32>
    %c0_22 = arith.constant 0 : index
    %c0_23 = arith.constant 0 : index
    %45 = vector.load %arg9[%c0_22, %c0_23] : memref<8x1xf32, #tpu.memory_space<vmem>>, vector<8x1xf32>
    tpu.vector_store %arg9[%c0_22, %c0_23], %44 {strides = array<i32>} : memref<8x1xf32, #tpu.memory_space<vmem>>, vector<8x1xf32>,
    return
  }
  func.func @transform_0(%arg0: i32, %arg1: memref<2xf32, #tpu.memory_space<smem>>) -> (i32, i32) {
    %c0_i32 = arith.constant 0 : i32
    %c0_i32_0 = arith.constant 0 : i32
    return %arg0, %c0_i32 : i32, i32
  }
  func.func @transform_1(%arg0: i32, %arg1: memref<2xf32, #tpu.memory_space<smem>>) -> (i32, i32) {
    %c0_i32 = arith.constant 0 : i32
    %c0_i32_0 = arith.constant 0 : i32
    return %arg0, %c0_i32 : i32, i32
  }
  func.func @transform_2(%arg0: i32, %arg1: memref<2xf32, #tpu.memory_space<smem>>) -> (i32, i32) {
    %c0_i32 = arith.constant 0 : i32
    %c0_i32_0 = arith.constant 0 : i32
    %c0_i32_1 = arith.constant 0 : i32
    return %c0_i32, %c0_i32_0 : i32, i32
  }
  func.func @transform_3(%arg0: i32, %arg1: memref<2xf32, #tpu.memory_space<smem>>) -> (i32, i32) {
    %c0_i32 = arith.constant 0 : i32
    %c0_i32_0 = arith.constant 0 : i32
    %c0_i32_1 = arith.constant 0 : i32
    return %c0_i32, %c0_i32_0 : i32, i32
  }
  func.func @transform_4(%arg0: i32, %arg1: memref<2xf32, #tpu.memory_space<smem>>) -> (i32, i32) {
    %c0_i32 = arith.constant 0 : i32
    %c0_i32_0 = arith.constant 0 : i32
    %c0_i32_1 = arith.constant 0 : i32
    return %c0_i32, %c0_i32_0 : i32, i32
  }
  func.func @transform_5(%arg0: i32, %arg1: memref<2xf32, #tpu.memory_space<smem>>) -> (i32, i32) {
    %c0_i32 = arith.constant 0 : i32
    %c0_i32_0 = arith.constant 0 : i32
    %c0_i32_1 = arith.constant 0 : i32
    return %c0_i32, %c0_i32_0 : i32, i32
  }
  func.func @transform_6(%arg0: i32, %arg1: memref<2xf32, #tpu.memory_space<smem>>) -> (i32, i32) {
    %c0_i32 = arith.constant 0 : i32
    %c0_i32_0 = arith.constant 0 : i32
    %c0_i32_1 = arith.constant 0 : i32
    return %c0_i32, %c0_i32_0 : i32, i32
  }
  func.func @transform_7(%arg0: i32, %arg1: memref<2xf32, #tpu.memory_space<smem>>) -> (i32, i32) {
    %c0_i32 = arith.constant 0 : i32
    %c0_i32_0 = arith.constant 0 : i32
    return %arg0, %c0_i32 : i32, i32
  }
}

</mosaic_0001>

<llo_original>
// kernel: tpu_custom_call.1
$region0: #{tpu_custom_call.1}
  #allocation0 [shape = 'u32[]', space=smem, size = 0x4, offset = 0x4, fixed_abs, tag = 'smem constant byte address 0x4 - core index']
  #allocation1 [shape = 'u32[144,128]{1,0:T(1,128)}', space=vmem, size = 0x12000, scoped, tag = 'internal scratch']
  #allocation2 [shape = 's32[1]{0}', space=sflag, size = 0x4, scoped, tag = 'scoped memory for tpu_custom_call.1']
  #allocation3 [shape = 'u8[512]{0}', space=smem, size = 0x200, scoped, tag = 'prefetched SMEM operand 0']
  %s0 = inlined_call_operand.vmem [shape: f32[2], index: 0, kind: input, shape index: {}]
  %s1 = inlined_call_operand.vmem [shape: f32[8,32], index: 1, kind: input, shape index: {}]
  %s2 = inlined_call_operand.vmem [shape: f32[8,4], index: 2, kind: input, shape index: {}]
  %s3 = inlined_call_operand.vmem [shape: f32[32,224], index: 3, kind: input, shape index: {}]
  %s4 = inlined_call_operand.vmem [shape: f32[1,224], index: 4, kind: input, shape index: {}]
  %s5 = inlined_call_operand.vmem [shape: f32[4,128], index: 5, kind: input, shape index: {}]
  %s6 = inlined_call_operand.vmem [shape: f32[128,32], index: 6, kind: input, shape index: {}]
  %s7 = inlined_call_operand.vmem [shape: f32[1,32], index: 7, kind: input, shape index: {}]
  %s8 = inlined_call_operand.vmem [shape: f32[8,1], index: 8, kind: output, shape index: {}]
  %s9 = sld [smem:[#allocation0]]
  $region38: #{tpu_custom_call.1} parent=0
    _
  %s11 = ssub.s32 1, %s9
  %s12 = scalar_select 0, %s11, %s9
  %s13 = sshll.u32 %s0, 4
  %s14 = int_to_ptr.vmem [resolvable:$true] %s13
  %16 = dma.vmem_to_smem %s14, 16, [#allocation3], [#allocation2]
  %17 = dma.done [#allocation2], 16
  %18 = sfence
  // Predicated region
  $region2: #{tpu_custom_call.1} parent=0 // pred_check
    _
  $region3: #{tpu_custom_call.1} parent=0 // pred_check_branch
    %20 = sbr.rel (0) target = $region5
  $region4: #{tpu_custom_call.1} parent=0 // pred_region
    _
  $region5: #{tpu_custom_call.1} parent=0 // pred_fallthru
    _
  // Predicated region
  $region6: #{tpu_custom_call.1} parent=0 // pred_check
    _
  $region7: #{tpu_custom_call.1} parent=0 // pred_check_branch
    %22 = sbr.rel (0) target = $region9
  $region8: #{tpu_custom_call.1} parent=0 // pred_region
    _
  $region9: #{tpu_custom_call.1} parent=0 // pred_fallthru
    _
  // Predicated region
  $region10: #{tpu_custom_call.1} parent=0 // pred_check
    _
  $region11: #{tpu_custom_call.1} parent=0 // pred_check_branch
    %24 = sbr.rel (0) target = $region13
  $region12: #{tpu_custom_call.1} parent=0 // pred_region
    _
  $region13: #{tpu_custom_call.1} parent=0 // pred_fallthru
    _
  // Predicated region
  $region14: #{tpu_custom_call.1} parent=0 // pred_check
    _
  $region15: #{tpu_custom_call.1} parent=0 // pred_check_branch
    %26 = sbr.rel (0) target = $region17
  $region16: #{tpu_custom_call.1} parent=0 // pred_region
    _
  $region17: #{tpu_custom_call.1} parent=0 // pred_fallthru
    _
  // Predicated region
  $region18: #{tpu_custom_call.1} parent=0 // pred_check
    _
  $region19: #{tpu_custom_call.1} parent=0 // pred_check_branch
    %28 = sbr.rel (0) target = $region21
  $region20: #{tpu_custom_call.1} parent=0 // pred_region
    _
  $region21: #{tpu_custom_call.1} parent=0 // pred_fallthru
    _
  // Predicated region
  $region22: #{tpu_custom_call.1} parent=0 // pred_check
    _
  $region23: #{tpu_custom_call.1} parent=0 // pred_check_branch
    %30 = sbr.rel (0) target = $region25
  $region24: #{tpu_custom_call.1} parent=0 // pred_region
    _
  $region25: #{tpu_custom_call.1} parent=0 // pred_fallthru
    _
  // Predicated region
  $region26: #{tpu_custom_call.1} parent=0 // pred_check
    _
  $region27: #{tpu_custom_call.1} parent=0 // pred_check_branch
    %32 = sbr.rel (0) target = $region29
  $region28: #{tpu_custom_call.1} parent=0 // pred_region
    _
  $region29: #{tpu_custom_call.1} parent=0 // pred_fallthru
    _
  %v33 = vld [vmem:[%s1] sm:$0xff]
  %v34 = vld [vmem:[%s2] sm:$0xff]
  %v35 = vld [vmem:[%s3] sm:$0xff]
  %v36 = vld [vmem:[%s3 + $0x8] sm:$0xff]
  %v37 = vld [vmem:[%s3 + $0x10] sm:$0xff]
  %v38 = vld [vmem:[%s3 + $0x18] sm:$0xff]
  %v39 = vld [vmem:[%s3 + $0x20] sm:$0xff]
  %v40 = vld [vmem:[%s3 + $0x28] sm:$0xff]
  %v41 = vld [vmem:[%s3 + $0x30] sm:$0xff]
  %v42 = vld [vmem:[%s3 + $0x38] sm:$0xff]
  %v43 = vld [vmem:[%s4] sm:$0x3]
  %v45 = vlaneseq
  %v46 = vshrl.u32 %v45, 7
  %v47 = vsub.s32 0, %v46
  %v48 = vrot.slane %v43, %v47
  %v49 = vlaneseq
  %v50 = vshrl.u32 %v49, 7
  %v51 = vsub.s32 1, %v50
  %v52 = vrot.slane %v43, %v51
  %vm55 = vcmask 261120
  %v57 = vsel %vm55, %v33, 0
  %59 = vmatprep.subr.mxu0 0.0
  %60 = vmatpush1.msra.mxu0 0.0
  %61 = vmatprep.subr.mxu0 0.0
  %62 = vmatpush1.msra.mxu0 0.0
  %63 = vmatprep.subr.mxu0 0.0
  %64 = vmatpush1.msra.mxu0 0.0
  %65 = vmatprep.subr.mxu0 0.0
  %66 = vmatpush1.msra.mxu0 0.0
  %67 = vmatprep.subr.mxu0 0.0
  %68 = vmatpush1.msra.mxu0 0.0
  %69 = vmatprep.subr.mxu0 0.0
  %70 = vmatpush1.msra.mxu0 0.0
  %71 = vmatprep.subr.mxu0 0.0
  %72 = vmatpush1.msra.mxu0 0.0
  %73 = vmatprep.subr.mxu0 0.0
  %74 = vmatpush1.msra.mxu0 0.0
  %75 = vmatprep.subr.mxu0 0.0
  %76 = vmatpush1.msra.mxu0 0.0
  %77 = vmatprep.subr.mxu0 0.0
  %78 = vmatpush1.msra.mxu0 0.0
  %79 = vmatprep.subr.mxu0 0.0
  %80 = vmatpush1.msra.mxu0 0.0
  %81 = vmatprep.subr.mxu0 0.0
  %82 = vmatpush1.msra.mxu0 0.0
  %83 = vmatprep.subr.mxu0 %v42
  %84 = vmatpush1.msra.mxu0 %v41
  %85 = vmatprep.subr.mxu0 %v40
  %86 = vmatpush1.msra.mxu0 %v39
  %87 = vmatprep.subr.mxu0 %v38
  %88 = vmatpush1.msra.mxu0 %v37
  %89 = vmatprep.subr.mxu0 %v36
  %90 = vmatpush1.msra.mxu0 %v35
  %91 = vmatprep.subr.mxu0 0.0
  %92 = vmatpush2.msra.mxu0 0.0
  %93 = vmatprep.subr.mxu0 0.0
  %94 = vmatpush2.msra.mxu0 0.0
  %95 = vmatprep.subr.mxu0 0.0
  %96 = vmatpush2.msra.mxu0 0.0
  %97 = vmatprep.subr.mxu0 0.0
  %98 = vmatpush2.msra.mxu0 0.0
  %99 = vmatprep.subr.mxu0 0.0
  %100 = vmatpush2.msra.mxu0 0.0
  %101 = vmatprep.subr.mxu0 0.0
  %102 = vmatpush2.msra.mxu0 0.0
  %103 = vmatprep.subr.mxu0 0.0
  %104 = vmatpush2.msra.mxu0 0.0
  %105 = vmatprep.subr.mxu0 0.0
  %106 = vmatpush2.msra.mxu0 0.0
  %107 = vmatprep.subr.mxu0 0.0
  %108 = vmatpush2.msra.mxu0 0.0
  %109 = vmatprep.subr.mxu0 0.0
  %110 = vmatpush2.msra.mxu0 0.0
  %111 = vmatprep.subr.mxu0 0.0
  %112 = vmatpush2.msra.mxu0 0.0
  %113 = vmatprep.subr.mxu0 0.0
  %114 = vmatpush2.msra.mxu0 0.0
  %115 = vmatprep.subr.mxu0 0.0
  %116 = vmatpush2.msra.mxu0 0.0
  %117 = vmatprep.subr.mxu0 0.0
  %118 = vmatpush2.msra.mxu0 0.0
  %119 = vmatprep.subr.mxu0 0.0
  %120 = vmatpush2.msra.mxu0 0.0
  %121 = vmatprep.subr.mxu0 0.0
  %122 = vmatpush2.msra.mxu0 0.0
  %123 = vmatprep.mubr.f32.mxu0 0.0
  %124 = vmatmul.mubr.f32.gmra.mxu0 %v57
  %v125 = vpop.f32.mrf.mxu0
  %v126 = vadd.f32 %v48, %v125
  %v127 = vpop.f32.mrf.mxu0
  %v128 = vadd.f32 %v52, %v127
  %129 = vdwg.mxu0
  %v130 = vand.u32 2147483647, %v126
  %v131 = vand.u32 2147483647, %v128
  %v132 = vmax.f32 %v128, 0.0
  %v133 = vld [vmem:[%s5] sm:$0xf]
  %vm134 = vcmask 31744
  %v136 = vsel %vm134, %v34, 0
  %vm138 = vcmask 1043456
  %v140 = vsel %vm138, %v133, 0
  %142 = vmatprep.subr.mxu0 0.0
  %143 = vmatpush1.msra.mxu0 0.0
  %144 = vmatprep.subr.mxu0 0.0
  %145 = vmatpush1.msra.mxu0 0.0
  %146 = vmatprep.subr.mxu0 0.0
  %147 = vmatpush1.msra.mxu0 0.0
  %148 = vmatprep.subr.mxu0 0.0
  %149 = vmatpush1.msra.mxu0 0.0
  %150 = vmatprep.subr.mxu0 0.0
  %151 = vmatpush1.msra.mxu0 0.0
  %152 = vmatprep.subr.mxu0 0.0
  %153 = vmatpush1.msra.mxu0 0.0
  %154 = vmatprep.subr.mxu0 0.0
  %155 = vmatpush1.msra.mxu0 0.0
  %156 = vmatprep.subr.mxu0 0.0
  %157 = vmatpush1.msra.mxu0 0.0
  %158 = vmatprep.subr.mxu0 0.0
  %159 = vmatpush1.msra.mxu0 0.0
  %160 = vmatprep.subr.mxu0 0.0
  %161 = vmatpush1.msra.mxu0 0.0
  %162 = vmatprep.subr.mxu0 0.0
  %163 = vmatpush1.msra.mxu0 0.0
  %164 = vmatprep.subr.mxu0 0.0
  %165 = vmatpush1.msra.mxu0 0.0
  %166 = vmatprep.subr.mxu0 0.0
  %167 = vmatpush1.msra.mxu0 0.0
  %168 = vmatprep.subr.mxu0 0.0
  %169 = vmatpush1.msra.mxu0 0.0
  %170 = vmatprep.subr.mxu0 0.0
  %171 = vmatpush1.msra.mxu0 0.0
  %172 = vmatprep.subr.mxu0 0.0
  %173 = vmatpush1.msra.mxu0 %v140
  %174 = vmatprep.subr.mxu0 0.0
  %175 = vmatpush2.msra.mxu0 0.0
  %176 = vmatprep.subr.mxu0 0.0
  %177 = vmatpush2.msra.mxu0 0.0
  %178 = vmatprep.subr.mxu0 0.0
  %179 = vmatpush2.msra.mxu0 0.0
  %180 = vmatprep.subr.mxu0 0.0
  %181 = vmatpush2.msra.mxu0 0.0
  %182 = vmatprep.subr.mxu0 0.0
  %183 = vmatpush2.msra.mxu0 0.0
  %184 = vmatprep.subr.mxu0 0.0
  %185 = vmatpush2.msra.mxu0 0.0
  %186 = vmatprep.subr.mxu0 0.0
  %187 = vmatpush2.msra.mxu0 0.0
  %188 = vmatprep.subr.mxu0 0.0
  %189 = vmatpush2.msra.mxu0 0.0
  %190 = vmatprep.subr.mxu0 0.0
  %191 = vmatpush2.msra.mxu0 0.0
  %192 = vmatprep.subr.mxu0 0.0
  %193 = vmatpush2.msra.mxu0 0.0
  %194 = vmatprep.subr.mxu0 0.0
  %195 = vmatpush2.msra.mxu0 0.0
  %196 = vmatprep.subr.mxu0 0.0
  %197 = vmatpush2.msra.mxu0 0.0
  %198 = vmatprep.subr.mxu0 0.0
  %199 = vmatpush2.msra.mxu0 0.0
  %200 = vmatprep.subr.mxu0 0.0
  %201 = vmatpush2.msra.mxu0 0.0
  %202 = vmatprep.subr.mxu0 0.0
  %203 = vmatpush2.msra.mxu0 0.0
  %204 = vmatprep.subr.mxu0 0.0
  %205 = vmatpush2.msra.mxu0 0.0
  %206 = vmatprep.mubr.f32.mxu0 0.0
  %207 = vmatmul.mubr.f32.gmra.mxu0 %v136
  %v208 = vpop.f32.mrf.mxu0
  %v209 = vadd.f32 0.0, %v208
  %v210 = vpop.f32.mrf.mxu0
  %211 = vdwg.mxu0
  %v212 = vmul.f32 %v209, %v130
  %v213 = vld [vmem:[%s6] sm:$0xff]
  %v214 = vld [vmem:[%s6 + $0x8] sm:$0xff]
  %v215 = vld [vmem:[%s6 + $0x10] sm:$0xff]
  %v216 = vld [vmem:[%s6 + $0x18] sm:$0xff]
  %v217 = vld [vmem:[%s6 + $0x20] sm:$0xff]
  %v218 = vld [vmem:[%s6 + $0x28] sm:$0xff]
  %v219 = vld [vmem:[%s6 + $0x30] sm:$0xff]
  %v220 = vld [vmem:[%s6 + $0x38] sm:$0xff]
  %v221 = vld [vmem:[%s6 + $0x40] sm:$0xff]
  %v222 = vld [vmem:[%s6 + $0x48] sm:$0xff]
  %v223 = vld [vmem:[%s6 + $0x50] sm:$0xff]
  %v224 = vld [vmem:[%s6 + $0x58] sm:$0xff]
  %v225 = vld [vmem:[%s6 + $0x60] sm:$0xff]
  %v226 = vld [vmem:[%s6 + $0x68] sm:$0xff]
  %v227 = vld [vmem:[%s6 + $0x70] sm:$0xff]
  %v228 = vld [vmem:[%s6 + $0x78] sm:$0xff]
  %229 = vmatprep.subr.mxu0 0.0
  %230 = vmatpush1.msra.mxu0 %v228
  %231 = vmatprep.subr.mxu0 0.0
  %232 = vmatpush1.msra.mxu0 %v227
  %233 = vmatprep.subr.mxu0 0.0
  %234 = vmatpush1.msra.mxu0 %v226
  %235 = vmatprep.subr.mxu0 0.0
  %236 = vmatpush1.msra.mxu0 %v225
  %237 = vmatprep.subr.mxu0 0.0
  %238 = vmatpush1.msra.mxu0 %v224
  %239 = vmatprep.subr.mxu0 0.0
  %240 = vmatpush1.msra.mxu0 %v223
  %241 = vmatprep.subr.mxu0 0.0
  %242 = vmatpush1.msra.mxu0 %v222
  %243 = vmatprep.subr.mxu0 0.0
  %244 = vmatpush1.msra.mxu0 %v221
  %245 = vmatprep.subr.mxu0 0.0
  %246 = vmatpush1.msra.mxu0 %v220
  %247 = vmatprep.subr.mxu0 0.0
  %248 = vmatpush1.msra.mxu0 %v219
  %249 = vmatprep.subr.mxu0 0.0
  %250 = vmatpush1.msra.mxu0 %v218
  %251 = vmatprep.subr.mxu0 0.0
  %252 = vmatpush1.msra.mxu0 %v217
  %253 = vmatprep.subr.mxu0 0.0
  %254 = vmatpush1.msra.mxu0 %v216
  %255 = vmatprep.subr.mxu0 0.0
  %256 = vmatpush1.msra.mxu0 %v215
  %257 = vmatprep.subr.mxu0 0.0
  %258 = vmatpush1.msra.mxu0 %v214
  %259 = vmatprep.subr.mxu0 0.0
  %260 = vmatpush1.msra.mxu0 %v213
  %261 = vmatprep.subr.mxu0 0.0
  %262 = vmatpush2.msra.mxu0 0.0
  %263 = vmatprep.subr.mxu0 0.0
  %264 = vmatpush2.msra.mxu0 0.0
  %265 = vmatprep.subr.mxu0 0.0
  %266 = vmatpush2.msra.mxu0 0.0
  %267 = vmatprep.subr.mxu0 0.0
  %268 = vmatpush2.msra.mxu0 0.0
  %269 = vmatprep.subr.mxu0 0.0
  %270 = vmatpush2.msra.mxu0 0.0
  %271 = vmatprep.subr.mxu0 0.0
  %272 = vmatpush2.msra.mxu0 0.0
  %273 = vmatprep.subr.mxu0 0.0
  %274 = vmatpush2.msra.mxu0 0.0
  %275 = vmatprep.subr.mxu0 0.0
  %276 = vmatpush2.msra.mxu0 0.0
  %277 = vmatprep.subr.mxu0 0.0
  %278 = vmatpush2.msra.mxu0 0.0
  %279 = vmatprep.subr.mxu0 0.0
  %280 = vmatpush2.msra.mxu0 0.0
  %281 = vmatprep.subr.mxu0 0.0
  %282 = vmatpush2.msra.mxu0 0.0
  %283 = vmatprep.subr.mxu0 0.0
  %284 = vmatpush2.msra.mxu0 0.0
  %285 = vmatprep.subr.mxu0 0.0
  %286 = vmatpush2.msra.mxu0 0.0
  %287 = vmatprep.subr.mxu0 0.0
  %288 = vmatpush2.msra.mxu0 0.0
  %289 = vmatprep.subr.mxu0 0.0
  %290 = vmatpush2.msra.mxu0 0.0
  %291 = vmatprep.subr.mxu0 0.0
  %292 = vmatpush2.msra.mxu0 0.0
  %293 = vmatprep.mubr.f32.mxu0 0.0
  %294 = vmatmul.mubr.f32.gmra.mxu0 %v212
  %v295 = vpop.f32.mrf.mxu0
  %v296 = vadd.f32 %v128, %v295
  %v297 = vpop.f32.mrf.mxu0
  %298 = vdwg.mxu0
  %vm299 = vcmp.gt.f32.partialorder %v296, 0.0
  %v300 = vmin.f32 %v296, 0.0
  %v301 = vmul.f32 %v300, 1.442695
  %v302 = vpow.pop %v301
  %v303 = vsub.f32 %v302, 1.0
  %v304 = vsel %vm299, %v296, %v303
  %s305 = sld [smem:[#allocation3]]
  %v306 = vstv %s305
  %v307 = vmul.f32 %v131, %v306
  %309 = vrot.lane.b32.xlu0 %v307, 96
  %v310 = vpop.permute.xlu0 %309
  %v312 = vmul.f32 %v304, %v310
  %v313 = vld [vmem:[%s7] sm:$0x1]
  %v315 = vlaneseq
  %v316 = vshrl.u32 %v315, 7
  %v317 = vsub.s32 0, %v316
  %v318 = vrot.slane %v313, %v317
  %319 = vrot.lane.b32.xlu0 %v318, 64
  %v320 = vpop.permute.xlu0 %319
  %v322 = vmul.f32 %v132, %v320
  %324 = vrot.lane.b32.xlu0 %v322, 64
  %v325 = vpop.permute.xlu0 %324
  %v327 = vadd.f32 %v312, %v325
  %v328 = vsel %vm55, %v327, 0.0
  %329 = vadd.xlane.f32.xlu0 %v328
  %v330 = vpop.xlane.xlu0 %329
  %s331 = sld [smem:[#allocation3 + $0x1]]
  %v332 = vstv %s331
  %v333 = vadd.f32 %v330, %v332
  %v334 = vsel %vm134, %v34, 0.0
  %335 = vadd.xlane.f32.xlu0 %v334
  %v336 = vpop.xlane.xlu0 %335
  %v337 = vadd.f32 %v333, %v336
  %vm338 = vcmask 7168
  %339 = vst.msk [vmem:[%s8] sm:$0xff] %vm338, %v337
  // Predicated region
  $region30: #{tpu_custom_call.1} parent=0 // pred_check
    _
  $region31: #{tpu_custom_call.1} parent=0 // pred_check_branch
    %341 = sbr.rel (0) target = $region33
  $region32: #{tpu_custom_call.1} parent=0 // pred_region
    _
  $region33: #{tpu_custom_call.1} parent=0 // pred_fallthru
    _
  // Predicated region
  $region34: #{tpu_custom_call.1} parent=0 // pred_check
    _
  $region35: #{tpu_custom_call.1} parent=0 // pred_check_branch
    %343 = sbr.rel (0) target = $region37
  $region36: #{tpu_custom_call.1} parent=0 // pred_region
    _
  $region37: #{tpu_custom_call.1} parent=0 // pred_fallthru
    _

</llo_original>
